<compile_context>
chip_gen: v7x
topology: tpu7x:2x2x1
jax: 0.10.0
libtpu: 0.0.40
codegen_flags: <defaults>
</compile_context>

<pallas_src>
import numpy as np
import jax
import jax.numpy as jnp
from jax.experimental import pallas as pl
from jax.experimental.pallas import tpu as pltpu

LRELU_SLOPE = 0.01      # nn.LeakyReLU default
BN_EPS = 1e-5           # nn.BatchNorm2d default
BASE = 16
ENC_STRIDES = (2, 1, 2, 1, 2, 1, 2, 1, 2)

KT = 8192               # K tile when the reduction dim is very large
TM_MAX = 4096           # max rows per M tile (review: 2048-4096)
TM_BUDGET = 12 << 20    # VMEM bytes allowed for the tm-scaled buffers
VMEM_LIMIT = 32 << 20   # explicit scoped-VMEM limit (safe on v5e/v6e/v7x)


def _round_up(x, m):
    return ((x + m - 1) // m) * m


# ----------------------------------------------------------------------------
# Pallas kernels
# ----------------------------------------------------------------------------
def _mm_kernel(activation):
    """Single-K-block matmul: fused bias + activation, no scratch."""
    def kernel(a_ref, b_ref, bias_ref, o_ref):
        y = jnp.dot(a_ref[...], b_ref[...], preferred_element_type=jnp.float32)
        y = y + bias_ref[...]
        if activation == "lrelu":
            y = jnp.where(y > 0, y, LRELU_SLOPE * y)
        elif activation == "tanh":
            y = jnp.tanh(y)
        o_ref[...] = y.astype(o_ref.dtype)
    return kernel


def _mm_multi_kernel(activation):
    """K-tiled matmul with an f32 accumulator scratch, fused epilogue."""
    def kernel(a_ref, b_ref, bias_ref, o_ref, acc_ref):
        k = pl.program_id(2)

        @pl.when(k == 0)
        def _():
            acc_ref[...] = jnp.zeros_like(acc_ref)

        acc_ref[...] += jnp.dot(a_ref[...], b_ref[...],
                                preferred_element_type=jnp.float32)

        @pl.when(k == pl.num_programs(2) - 1)
        def _():
            y = acc_ref[...] + bias_ref[...]
            if activation == "lrelu":
                y = jnp.where(y > 0, y, LRELU_SLOPE * y)
            elif activation == "tanh":
                y = jnp.tanh(y)
            o_ref[...] = y.astype(o_ref.dtype)
    return kernel


def _stats_rows(y):
    """Per-channel (sum, sumsq) of a (tm, C) f32 tile, padded to 8 sublanes."""
    s = jnp.sum(y, axis=0, keepdims=True)
    ss = jnp.sum(y * y, axis=0, keepdims=True)
    st = jnp.concatenate([s, ss], axis=0)                    # (2, C)
    return jnp.concatenate([st, st, st, st], axis=0)[None]   # (1, 8, C)


def _mm_stats_kernel(a_ref, b_ref, o_ref, st_ref):
    """Bias-free conv matmul with BatchNorm sum/sumsq fused in the epilogue."""
    y = jnp.dot(a_ref[...], b_ref[...], preferred_element_type=jnp.float32)
    o_ref[...] = y.astype(o_ref.dtype)
    st_ref[...] = _stats_rows(y)


def _mm_stats_multi_kernel(a_ref, b_ref, o_ref, st_ref, acc_ref):
    k = pl.program_id(1)

    @pl.when(k == 0)
    def _():
        acc_ref[...] = jnp.zeros_like(acc_ref)

    acc_ref[...] += jnp.dot(a_ref[...], b_ref[...],
                            preferred_element_type=jnp.float32)

    @pl.when(k == pl.num_programs(1) - 1)
    def _():
        y = acc_ref[...]
        o_ref[...] = y.astype(o_ref.dtype)
        st_ref[...] = _stats_rows(y)


def _bn_apply_kernel(x_ref, sc_ref, sh_ref, o_ref):
    """y = x*scale + shift (folded BatchNorm) followed by LeakyReLU."""
    y = x_ref[...].astype(jnp.float32) * sc_ref[...] + sh_ref[...]
    o_ref[...] = jnp.where(y > 0, y, LRELU_SLOPE * y).astype(o_ref.dtype)


def _reparam_kernel(mu_ref, lv_ref, eps_ref, z_ref):
    z_ref[...] = mu_ref[...] + eps_ref[...] * jnp.exp(0.5 * lv_ref[...])


# ----------------------------------------------------------------------------
# Pallas wrappers
# ----------------------------------------------------------------------------
def pallas_matmul(a, b, bias=None, activation=None, out_dtype=jnp.float32,
                  stats=False):
    """a:(M,K) @ b:(K,C) on the MXU (bf16 operands, f32 accumulation).

    Optional fused bias / LeakyReLU / Tanh epilogue.  With stats=True the
    kernel also emits per-M-tile (sum, sumsq) partials of the raw matmul
    result (fused BatchNorm statistics); the tiny final reduction is in JAX.
    """
    M, K = a.shape
    C = b.shape[1]
    a = a.astype(jnp.bfloat16)
    b = b.astype(jnp.bfloat16)

    # K tiling (always pad to a sublane-aligned multiple of 8).
    if K > KT:
        tk, Kp = KT, _round_up(K, KT)
    else:
        Kp = _round_up(K, 8)
        tk = Kp
    # Output-channel tiling: gives the second TensorCore work on v7x for the
    # wide 512/1024-channel layers.
    tc = 256 if (C >= 512 and C % 256 == 0) else C
    # M tiling: as large as the VMEM budget allows (fewer grid steps).
    out_bytes = jnp.dtype(out_dtype).itemsize
    per_row = 2 * (2 * tk) + 2 * (out_bytes * tc) + 4 * tc
    cap = max(256, (TM_BUDGET // per_row) // 8 * 8)
    tm = min(cap, TM_MAX, _round_up(M, 8))
    Mp = _round_up(M, tm)

    if Mp != M:
        a = jnp.pad(a, ((0, Mp - M), (0, 0)))
    if Kp != K:
        a = jnp.pad(a, ((0, 0), (0, Kp - K)))
        b = jnp.pad(b, ((0, Kp - K), (0, 0)))

    gm, gj, gk = Mp // tm, C // tc, Kp // tk

    if stats:
        # Conv blocks are bias-free, no activation, and have C <= 64 (gj == 1).
        assert bias is None and activation is None and gj == 1
        st_shape = jax.ShapeDtypeStruct((gm, 8, C), jnp.float32)
        if gk == 1:
            out, st = pl.pallas_call(
                _mm_stats_kernel,
                out_shape=(jax.ShapeDtypeStruct((Mp, C), out_dtype), st_shape),
                grid_spec=pltpu.PrefetchScalarGridSpec(
                    num_scalar_prefetch=0, grid=(gm,),
                    in_specs=[pl.BlockSpec((tm, tk), lambda i: (i, 0)),
                              pl.BlockSpec((tk, C), lambda i: (0, 0))],
                    out_specs=(pl.BlockSpec((tm, C), lambda i: (i, 0)),
                               pl.BlockSpec((1, 8, C), lambda i: (i, 0, 0)))),
                compiler_params=pltpu.CompilerParams(
                    dimension_semantics=("parallel",),
                    vmem_limit_bytes=VMEM_LIMIT),
            )(a, b)
        else:
            out, st = pl.pallas_call(
                _mm_stats_multi_kernel,
                out_shape=(jax.ShapeDtypeStruct((Mp, C), out_dtype), st_shape),
                grid_spec=pltpu.PrefetchScalarGridSpec(
                    num_scalar_prefetch=0, grid=(gm, gk),
                    in_specs=[pl.BlockSpec((tm, tk), lambda i, k: (i, k)),
                              pl.BlockSpec((tk, C), lambda i, k: (k, 0))],
                    out_specs=(pl.BlockSpec((tm, C), lambda i, k: (i, 0)),
                               pl.BlockSpec((1, 8, C), lambda i, k: (i, 0, 0))),
                    scratch_shapes=[pltpu.VMEM((tm, C), jnp.float32)]),
                compiler_params=pltpu.CompilerParams(
                    dimension_semantics=("parallel", "arbitrary"),
                    vmem_limit_bytes=VMEM_LIMIT),
            )(a, b)
        return out[:M], st[:, 0, :].sum(axis=0), st[:, 1, :].sum(axis=0)

    if bias is None:
        bias = jnp.zeros((C,), jnp.float32)
    bias2 = bias.reshape(1, C).astype(jnp.float32)

    if gk == 1:
        out = pl.pallas_call(
            _mm_kernel(activation),
            out_shape=jax.ShapeDtypeStruct((Mp, C), out_dtype),
            grid_spec=pltpu.PrefetchScalarGridSpec(
                num_scalar_prefetch=0, grid=(gm, gj),
                in_specs=[pl.BlockSpec((tm, tk), lambda i, j: (i, 0)),
                          pl.BlockSpec((tk, tc), lambda i, j: (0, j)),
                          pl.BlockSpec((1, tc), lambda i, j: (0, j))],
                out_specs=pl.BlockSpec((tm, tc), lambda i, j: (i, j))),
            compiler_params=pltpu.CompilerParams(
                dimension_semantics=("parallel", "parallel"),
                vmem_limit_bytes=VMEM_LIMIT),
        )(a, b, bias2)
    else:
        out = pl.pallas_call(
            _mm_multi_kernel(activation),
            out_shape=jax.ShapeDtypeStruct((Mp, C), out_dtype),
            grid_spec=pltpu.PrefetchScalarGridSpec(
                num_scalar_prefetch=0, grid=(gm, gj, gk),
                in_specs=[pl.BlockSpec((tm, tk), lambda i, j, k: (i, k)),
                          pl.BlockSpec((tk, tc), lambda i, j, k: (k, j)),
                          pl.BlockSpec((1, tc), lambda i, j, k: (0, j))],
                out_specs=pl.BlockSpec((tm, tc), lambda i, j, k: (i, j)),
                scratch_shapes=[pltpu.VMEM((tm, tc), jnp.float32)]),
            compiler_params=pltpu.CompilerParams(
                dimension_semantics=("parallel", "parallel", "arbitrary"),
                vmem_limit_bytes=VMEM_LIMIT),
        )(a, b, bias2)
    return out[:M]


def bn_apply_lrelu(y2d, scale, shift):
    """(x*scale + shift) then LeakyReLU, lane-dense: rows are folded into the
    lane axis so every vector register / store is a full 128 lanes wide."""
    M, C = y2d.shape
    g = 1
    if C < 128 and 128 % C == 0 and M % (128 // C) == 0:
        g = 128 // C
    Mg, Cg = M // g, g * C
    x = y2d.reshape(Mg, Cg)
    sc = jnp.tile(scale.reshape(1, C).astype(jnp.float32), (1, g))
    sh = jnp.tile(shift.reshape(1, C).astype(jnp.float32), (1, g))

    tm = min(TM_MAX, _round_up(Mg, 8))
    Mp = _round_up(Mg, tm)
    if Mp != Mg:
        x = jnp.pad(x, ((0, Mp - Mg), (0, 0)))

    out = pl.pallas_call(
        _bn_apply_kernel,
        out_shape=jax.ShapeDtypeStruct((Mp, Cg), jnp.bfloat16),
        grid_spec=pltpu.PrefetchScalarGridSpec(
            num_scalar_prefetch=0, grid=(Mp // tm,),
            in_specs=[pl.BlockSpec((tm, Cg), lambda i: (i, 0)),
                      pl.BlockSpec((1, Cg), lambda i: (0, 0)),
                      pl.BlockSpec((1, Cg), lambda i: (0, 0))],
            out_specs=pl.BlockSpec((tm, Cg), lambda i: (i, 0))),
        compiler_params=pltpu.CompilerParams(
            dimension_semantics=("parallel",), vmem_limit_bytes=VMEM_LIMIT),
    )(x, sc, sh)
    return out[:Mg].reshape(M, C)


# ----------------------------------------------------------------------------
# Layer building blocks (layout glue in JAX, math in Pallas)
# ----------------------------------------------------------------------------
def _im2col_mat(x, k, stride, padding):
    """Flatten conv receptive fields to a (N*Ho*Wo, k*k*C) matrix."""
    N, H, W, C = x.shape
    if k == 1 and padding == 0:
        xs = x[:, ::stride, ::stride, :]
        Ho, Wo = xs.shape[1], xs.shape[2]
        return xs.reshape(N * Ho * Wo, C), Ho, Wo
    xp = jnp.pad(x, ((0, 0), (padding, padding), (padding, padding), (0, 0)))
    Hp, Wp = H + 2 * padding, W + 2 * padding
    Ho = (Hp - k) // stride + 1
    Wo = (Wp - k) // stride + 1
    if Hp == k and Wp == k:
        # receptive field covers the whole (padded) input: pure reshape
        return xp.reshape(N, k * k * C), 1, 1
    # TODO(synk): replace im2col for the stride-1 3x3 layers with a direct-conv
    # kernel (flat-shift accumulation over a VMEM-resident padded input) to
    # remove the remaining k*k activation duplication in HBM.
    cols = []
    for kh in range(k):
        for kw in range(k):
            cols.append(xp[:, kh:kh + stride * (Ho - 1) + 1:stride,
                           kw:kw + stride * (Wo - 1) + 1:stride, :])
    patches = jnp.stack(cols, axis=3)                 # (N, Ho, Wo, k*k, C)
    return patches.reshape(N * Ho * Wo, k * k * C), Ho, Wo


def conv2d(x, w, *, stride=1, padding=0, bias=None, activation=None,
           out_dtype=jnp.float32):
    """nn.Conv2d (NHWC activations, HWIO weights) via im2col + Pallas matmul."""
    k, _, cin, cout = w.shape
    N = x.shape[0]
    a, Ho, Wo = _im2col_mat(x, k, stride, padding)
    out = pallas_matmul(a, w.reshape(k * k * cin, cout), bias=bias,
                        activation=activation, out_dtype=out_dtype)
    return out.reshape(N, Ho, Wo, cout)


def conv_block(x, w, *, stride=1, padding=0):
    """`Conv` module: Conv2d(bias=False) + BatchNorm2d (training-mode batch
    stats, gamma=1, beta=0) + LeakyReLU.  BN statistics are fused into the conv
    matmul epilogue; only the normalize+activate pass re-reads the slab."""
    k, _, cin, cout = w.shape
    N = x.shape[0]
    a, Ho, Wo = _im2col_mat(x, k, stride, padding)
    M = N * Ho * Wo
    y, s, ss = pallas_matmul(a, w.reshape(k * k * cin, cout),
                             out_dtype=jnp.bfloat16, stats=True)
    mean = s / M
    var = jnp.maximum(ss / M - mean * mean, 0.0)   # guard E[x^2]-mean^2 cancel
    inv = jax.lax.rsqrt(var + BN_EPS)
    out = bn_apply_lrelu(y, inv, -mean * inv)
    return out.reshape(N, Ho, Wo, cout)


def _interp_matrix(in_size, out_size):
    # 1-D bilinear, align_corners=False (F.interpolate default)
    W = np.zeros((out_size, in_size), np.float32)
    scale = in_size / out_size
    for o in range(out_size):
        src = (o + 0.5) * scale - 0.5
        src = min(max(src, 0.0), in_size - 1.0)
        lo = int(np.floor(src))
        hi = min(lo + 1, in_size - 1)
        t = src - lo
        W[o, lo] += 1.0 - t
        W[o, hi] += t
    return W


_UPSAMPLE_OP_CACHE = {}


def _upsample_operator(H, W, scale):
    key = (H, W, scale)
    if key not in _UPSAMPLE_OP_CACHE:
        _UPSAMPLE_OP_CACHE[key] = np.kron(_interp_matrix(H, H * scale),
                                          _interp_matrix(W, W * scale))
    return jnp.asarray(_UPSAMPLE_OP_CACHE[key])      # (Ho*Wo, H*W)


def bilinear_upsample(x, scale):
    """F.interpolate(mode='bilinear') as ONE Pallas matmul against the combined
    (row x col) interpolation operator (no intermediate transposes/launches)."""
    N, H, W, C = x.shape
    Ho, Wo = H * scale, W * scale
    if H == 1 and W == 1:
        # bilinear on a 1x1 map is pure replication (data movement only)
        return jnp.broadcast_to(x, (N, Ho, Wo, C))
    op = _upsample_operator(H, W, scale)                            # (HoWo, HW)
    x2 = jnp.transpose(x.reshape(N, H * W, C), (1, 0, 2)).reshape(H * W, N * C)
    y = pallas_matmul(op, x2, out_dtype=jnp.bfloat16)               # (HoWo, N*C)
    y = jnp.transpose(y.reshape(Ho * Wo, N, C), (1, 0, 2))
    return y.reshape(N, Ho, Wo, C)


def conv_upsampling(x, w, *, stride, padding):
    """`ConvUpsampling` module: bilinear x kernel_size, then Conv block."""
    return conv_block(bilinear_upsample(x, w.shape[0]), w,
                      stride=stride, padding=padding)


# ----------------------------------------------------------------------------
# Model parameters (deterministic synthetic init) and forward pass
# ----------------------------------------------------------------------------
def init_params(key):
    keys = iter(jax.random.split(key, 64))

    def wmat(k, cin, cout):
        w = (jax.random.normal(next(keys), (k, k, cin, cout), jnp.float32)
             / np.sqrt(k * k * cin))
        return w.astype(jnp.bfloat16)      # weights live in bf16 (MXU operand)

    def bvec(c):
        return jax.random.normal(next(keys), (c,), jnp.float32) * 0.02

    b = BASE
    enc_defs = [(1, b), (b, 2 * b), (2 * b, 2 * b), (2 * b, 2 * b),
                (2 * b, 2 * b), (2 * b, 4 * b), (4 * b, 4 * b),
                (4 * b, 4 * b), (4 * b, 4 * b)]
    params = {
        "enc": [wmat(3, ci, co) for ci, co in enc_defs],
        "enc_final_w": wmat(8, 4 * b, 64 * b), "enc_final_b": bvec(64 * b),
        "mu_w": wmat(1, 64 * b, 32 * b), "mu_b": bvec(32 * b),
        "lv_w": wmat(1, 64 * b, 32 * b), "lv_b": bvec(32 * b),
    }

    def decoder_like():
        return dict(
            d0_w=wmat(1, 32 * b, 64 * b), d0_b=bvec(64 * b),
            u1_w=wmat(8, 64 * b, 4 * b),
            c1_w=wmat(3, 4 * b, 4 * b),
            u2_w=wmat(4, 4 * b, 4 * b),
            c2_w=wmat(3, 4 * b, 4 * b),
            u3_w=wmat(4, 4 * b, 4 * b),
            c3_w=wmat(3, 4 * b, 2 * b),
            u4_w=wmat(4, 2 * b, 2 * b),
            c4_w=wmat(3, 2 * b, 2 * b),
            u5_w=wmat(4, 2 * b, 2 * b),
            c5_w=wmat(3, 2 * b, b),
            u6_w=wmat(4, b, b),
        )

    dec = decoder_like()
    dec["out_w"] = wmat(1, b, 3)
    dec["out_b"] = bvec(3)
    params["dec"] = dec

    abr = decoder_like()                # the c1..c7 / u1..u6 branch (own params)
    abr["c7_w"] = wmat(3, b, 1)
    abr["c7_b"] = bvec(1)
    params["abr"] = abr
    return params


def decoder_stack(p, z, *, final_w, final_b, final_pad, final_act):
    h = conv2d(z, p["d0_w"], bias=p["d0_b"], out_dtype=jnp.bfloat16)  # 1x1 conv
    h = conv_upsampling(h, p["u1_w"], stride=1, padding=0)   # x8 then k8 conv
    h = conv_block(h, p["c1_w"], padding=1)
    h = conv_upsampling(h, p["u2_w"], stride=2, padding=1)
    h = conv_block(h, p["c2_w"], padding=1)
    h = conv_upsampling(h, p["u3_w"], stride=2, padding=1)
    h = conv_block(h, p["c3_w"], padding=1)
    h = conv_upsampling(h, p["u4_w"], stride=2, padding=1)
    h = conv_block(h, p["c4_w"], padding=1)
    h = conv_upsampling(h, p["u5_w"], stride=2, padding=1)
    h = conv_block(h, p["c5_w"], padding=1)
    h = conv_upsampling(h, p["u6_w"], stride=2, padding=1)
    return conv2d(h, p[final_w], padding=final_pad,
                  bias=p[final_b], activation=final_act)


def vae_forward(params, x_nchw, eps_nhwc):
    x = jnp.transpose(x_nchw, (0, 2, 3, 1)).astype(jnp.bfloat16)  # NCHW -> NHWC

    # ---- encoder ----
    h = x
    for w, s in zip(params["enc"], ENC_STRIDES):
        h = conv_block(h, w, stride=s, padding=1)
    h = conv2d(h, params["enc_final_w"], bias=params["enc_final_b"],
               activation="lrelu", out_dtype=jnp.bfloat16)   # Conv2d(64,1024,8)
    mu = conv2d(h, params["mu_w"], bias=params["mu_b"])
    logvar = conv2d(h, params["lv_w"], bias=params["lv_b"])

    # ---- reparameterize (Pallas elementwise kernel) ----
    N, _, _, C = mu.shape
    z2 = pl.pallas_call(
        _reparam_kernel,
        out_shape=jax.ShapeDtypeStruct((N, C), jnp.float32),
        compiler_params=pltpu.CompilerParams(vmem_limit_bytes=VMEM_LIMIT),
    )(mu.reshape(N, C), logvar.reshape(N, C), eps_nhwc.reshape(N, C))
    z = z2.reshape(N, 1, 1, C)

    # ---- decode(z) (the returned reconstruction) ----
    recon = decoder_stack(params["dec"], z, final_w="out_w", final_b="out_b",
                          final_pad=1, final_act="tanh")

    # ---- the reference forward also runs the c1..c7 / u1..u6 branch on z and
    #      discards the result (only prints shapes); compute it as well.
    aux = decoder_stack(params["abr"], z, final_w="c7_w", final_b="c7_b",
                        final_pad=1, final_act=None)

    return (jnp.transpose(recon, (0, 3, 1, 2)),        # (N, 3, 34, 34)
            jnp.transpose(mu, (0, 3, 1, 2)),           # (N, 512, 1, 1)
            jnp.transpose(logvar, (0, 3, 1, 2)),       # (N, 512, 1, 1)
            jnp.transpose(aux, (0, 3, 1, 2)))          # (N, 1, 32, 32)


if __name__ == "__main__":
    root = jax.random.PRNGKey(0)
    k_param, k_x, k_eps = jax.random.split(root, 3)

    # quick sanity check of the fused matmul kernel against XLA (bf16 ref)
    a_t = jax.random.normal(jax.random.PRNGKey(1), (64, 40), jnp.float32)
    b_t = jax.random.normal(jax.random.PRNGKey(2), (40, 16), jnp.float32)
    ref = jnp.dot(a_t.astype(jnp.bfloat16), b_t.astype(jnp.bfloat16),
                  preferred_element_type=jnp.float32)
    got = pallas_matmul(a_t, b_t)
    assert jnp.allclose(got, ref, atol=5e-2, rtol=5e-2), "matmul mismatch"

    params = init_params(k_param)
    # smallest input the encoder's final k=8 conv admits: 1x256x256
    x = jax.random.normal(k_x, (2, 1, 256, 256), jnp.float32)
    eps = jax.random.normal(k_eps, (2, 1, 1, 32 * BASE), jnp.float32)

    fwd = jax.jit(vae_forward)
    recon, mu, logvar, aux = fwd(params, x, eps)
    jax.block_until_ready((recon, mu, logvar, aux))

    assert recon.shape == (2, 3, 34, 34)
    assert mu.shape == (2, 512, 1, 1)
    assert logvar.shape == (2, 512, 1, 1)
    assert aux.shape == (2, 1, 32, 32)
    assert bool(jnp.all(jnp.isfinite(recon)))
    assert bool(jnp.all(jnp.isfinite(mu)))
    assert bool(jnp.all(jnp.isfinite(logvar)))
    assert bool(jnp.all(jnp.isfinite(aux)))
    print("KERNEL_OK")
</pallas_src>

<mosaic_0001>
module attributes {stable_mosaic.version = 11 : i64} {
  func.func @kernel(%arg0: i32, %arg1: i32, %arg2: memref<64x40xbf16, #tpu.memory_space<vmem>>, %arg3: memref<40x16xbf16, #tpu.memory_space<vmem>>, %arg4: memref<1x16xf32, #tpu.memory_space<vmem>>, %arg5: memref<64x16xf32, #tpu.memory_space<vmem>>) attributes {dimension_semantics = [#tpu.dimension_semantics<parallel>, #tpu.dimension_semantics<parallel>], iteration_bounds = array<i64: 1, 1>, scalar_prefetch = 0 : i64, scratch_operands = 0 : i64, tpu.core_type = #tpu.core_type<tc>, window_params = [{transform_indices = @transform_0, window_bounds = array<i64: 64, 40>}, {transform_indices = @transform_1, window_bounds = array<i64: 40, 16>}, {transform_indices = @transform_2, window_bounds = array<i64: 1, 16>}, {transform_indices = @transform_3, window_bounds = array<i64: 64, 16>}]} {
    %c0 = arith.constant 0 : index
    %c0_0 = arith.constant 0 : index
    %0 = vector.load %arg2[%c0, %c0_0] : memref<64x40xbf16, #tpu.memory_space<vmem>>, vector<64x40xbf16>
    %c0_1 = arith.constant 0 : index
    %c0_2 = arith.constant 0 : index
    %1 = vector.load %arg3[%c0_1, %c0_2] : memref<40x16xbf16, #tpu.memory_space<vmem>>, vector<40x16xbf16>
    %cst = arith.constant dense<0.000000e+00> : vector<64x16xf32>
    %2 = tpu.matmul %0, %1, %cst {dimension_numbers = #tpu.dot_dimension_numbers<[1], [0], [0], [1], [0, 0, 1, 1], [], []>} : vector<64x40xbf16>, vector<40x16xbf16>, vector<64x16xf32> -> vector<64x16xf32>
    %c0_3 = arith.constant 0 : index
    %c0_4 = arith.constant 0 : index
    %3 = vector.load %arg4[%c0_3, %c0_4] : memref<1x16xf32, #tpu.memory_space<vmem>>, vector<1x16xf32>
    %4 = vector.broadcast %3 : vector<1x16xf32> to vector<64x16xf32>
    %5 = arith.addf %2, %4 : vector<64x16xf32>
    %c0_5 = arith.constant 0 : index
    %c0_6 = arith.constant 0 : index
    %6 = vector.load %arg5[%c0_5, %c0_6] : memref<64x16xf32, #tpu.memory_space<vmem>>, vector<64x16xf32>
    tpu.vector_store %arg5[%c0_5, %c0_6], %5 {strides = array<i32>} : memref<64x16xf32, #tpu.memory_space<vmem>>, vector<64x16xf32>,
    return
  }
  func.func @transform_0(%arg0: i32, %arg1: i32) -> (i32, i32) {
    %c0_i32 = arith.constant 0 : i32
    %c0_i32_0 = arith.constant 0 : i32
    return %arg0, %c0_i32 : i32, i32
  }
  func.func @transform_1(%arg0: i32, %arg1: i32) -> (i32, i32) {
    %c0_i32 = arith.constant 0 : i32
    %c0_i32_0 = arith.constant 0 : i32
    return %c0_i32, %arg1 : i32, i32
  }
  func.func @transform_2(%arg0: i32, %arg1: i32) -> (i32, i32) {
    %c0_i32 = arith.constant 0 : i32
    %c0_i32_0 = arith.constant 0 : i32
    return %c0_i32, %arg1 : i32, i32
  }
  func.func @transform_3(%arg0: i32, %arg1: i32) -> (i32, i32) {
    %c0_i32 = arith.constant 0 : i32
    return %arg0, %arg1 : i32, i32
  }
}

</mosaic_0001>

<llo_original>
// kernel: tpu_custom_call.1
$region0: #{tpu_custom_call.1}
  #allocation0 [shape = 'u32[]', space=smem, size = 0x4, offset = 0x4, fixed_abs, tag = 'smem constant byte address 0x4 - core index']
  #allocation1 [shape = 'u32[144,128]{1,0:T(1,128)}', space=vmem, size = 0x12000, scoped, tag = 'internal scratch']
  %s0 = inlined_call_operand.vmem [shape: bf16[64,40], index: 0, kind: input, shape index: {}]
  %s1 = inlined_call_operand.vmem [shape: bf16[40,16], index: 1, kind: input, shape index: {}]
  %s2 = inlined_call_operand.vmem [shape: f32[1,16], index: 2, kind: input, shape index: {}]
  %s3 = inlined_call_operand.vmem [shape: f32[64,16], index: 3, kind: output, shape index: {}]
  %s4 = sld [smem:[#allocation0]]
  $region22: #{tpu_custom_call.1} parent=0
    _
  %s6 = ssub.s32 1, %s4
  %s7 = scalar_select 0, %s6, %s4
  // Predicated region
  $region2: #{tpu_custom_call.1} parent=0 // pred_check
    _
  $region3: #{tpu_custom_call.1} parent=0 // pred_check_branch
    %9 = sbr.rel (0) target = $region5
  $region4: #{tpu_custom_call.1} parent=0 // pred_region
    _
  $region5: #{tpu_custom_call.1} parent=0 // pred_fallthru
    _
  // Predicated region
  $region6: #{tpu_custom_call.1} parent=0 // pred_check
    _
  $region7: #{tpu_custom_call.1} parent=0 // pred_check_branch
    %11 = sbr.rel (0) target = $region9
  $region8: #{tpu_custom_call.1} parent=0 // pred_region
    _
  $region9: #{tpu_custom_call.1} parent=0 // pred_fallthru
    _
  // Predicated region
  $region10: #{tpu_custom_call.1} parent=0 // pred_check
    _
  $region11: #{tpu_custom_call.1} parent=0 // pred_check_branch
    %13 = sbr.rel (0) target = $region13
  $region12: #{tpu_custom_call.1} parent=0 // pred_region
    _
  $region13: #{tpu_custom_call.1} parent=0 // pred_fallthru
    _
  %v15 = vld [vmem:[%s0] sm:$0xf]
  %v16 = vld [vmem:[%s0 + $0x4] sm:$0xf]
  %v17 = vld [vmem:[%s0 + $0x8] sm:$0xf]
  %v18 = vld [vmem:[%s0 + $0xc] sm:$0xf]
  %v19 = vld [vmem:[%s0 + $0x10] sm:$0xf]
  %v20 = vld [vmem:[%s0 + $0x14] sm:$0xf]
  %v21 = vld [vmem:[%s0 + $0x18] sm:$0xf]
  %v22 = vld [vmem:[%s0 + $0x1c] sm:$0xf]
  %v23 = vld [vmem:[%s1] sm:$0xf]
  %v24 = vld [vmem:[%s1 + $0x4] sm:$0xf]
  %v25 = vld [vmem:[%s1 + $0x8] sm:$0xf]
  %v26 = vld [vmem:[%s1 + $0xc] sm:$0xf]
  %v27 = vld [vmem:[%s1 + $0x10] sm:$0xf]
  %v28 = vld [vmem:[%s2] sm:$0x1]
  %v30 = vlaneseq
  %v31 = vshrl.u32 %v30, 7
  %v32 = vsub.s32 0, %v31
  %v33 = vrot.slane %v28, %v32
  %v43 = vunpack.c.l.b16 %v15
  %v44 = vunpack.c.l.b16 %v16
  %v45 = vunpack.c.l.b16 %v17
  %v46 = vunpack.c.l.b16 %v18
  %v47 = vunpack.c.l.b16 %v19
  %v48 = vunpack.c.l.b16 %v20
  %v49 = vunpack.c.l.b16 %v21
  %v50 = vunpack.c.l.b16 %v22
  %v51 = vpack.c.b16 %v44, %v43
  %v52 = vpack.c.b16 %v46, %v45
  %v53 = vpack.c.b16 %v48, %v47
  %v54 = vpack.c.b16 %v50, %v49
  %v60 = vunpack.c.l.b16 %v23
  %v61 = vunpack.c.l.b16 %v24
  %v62 = vunpack.c.l.b16 %v25
  %v63 = vunpack.c.l.b16 %v26
  %v64 = vunpack.c.l.b16 %v27
  %v65 = vpack.c.b16 %v61, %v60
  %v66 = vpack.c.b16 %v63, %v62
  %v67 = vpack.c.b16 %v64, %v64
  %vm70 = vcmask 326656
  %v72 = vsel %vm70, %v51, 0
  %v75 = vsel %vm70, %v52, 0
  %v78 = vsel %vm70, %v53, 0
  %v81 = vsel %vm70, %v54, 0
  %vm83 = vcmask 1043456
  %v85 = vsel %vm83, %v67, 0
  %87 = vmatprep.subr.bf16.mxu0 0
  %88 = vmatpush1.bf16.msra.mxu0 %v65
  %89 = vmatprep.subr.bf16.mxu0 0
  %90 = vmatpush1.bf16.msra.mxu0 %v66
  %91 = vmatprep.subr.bf16.mxu0 0
  %92 = vmatpush1.bf16.msra.mxu0 %v85
  %93 = vmatprep.subr.bf16.mxu0 0
  %94 = vmatpush1.bf16.msra.mxu0 0
  %95 = vmatprep.subr.bf16.mxu0 0
  %96 = vmatpush1.bf16.msra.mxu0 0
  %97 = vmatprep.subr.bf16.mxu0 0
  %98 = vmatpush1.bf16.msra.mxu0 0
  %99 = vmatprep.subr.bf16.mxu0 0
  %100 = vmatpush1.bf16.msra.mxu0 0
  %101 = vmatprep.subr.bf16.mxu0 0
  %102 = vmatpush1.bf16.msra.mxu0 0
  %103 = vmatprep.subr.bf16.mxu0 0
  %104 = vmatpush1.bf16.msra.mxu0 0
  %105 = vmatprep.subr.bf16.mxu0 0
  %106 = vmatpush1.bf16.msra.mxu0 0
  %107 = vmatprep.subr.bf16.mxu0 0
  %108 = vmatpush1.bf16.msra.mxu0 0
  %109 = vmatprep.subr.bf16.mxu0 0
  %110 = vmatpush1.bf16.msra.mxu0 0
  %111 = vmatprep.subr.bf16.mxu0 0
  %112 = vmatpush1.bf16.msra.mxu0 0
  %113 = vmatprep.subr.bf16.mxu0 0
  %114 = vmatpush1.bf16.msra.mxu0 0
  %115 = vmatprep.subr.bf16.mxu0 0
  %116 = vmatpush1.bf16.msra.mxu0 0
  %117 = vmatprep.subr.bf16.mxu0 0
  %118 = vmatpush1.bf16.msra.mxu0 0
  %119 = vmatprep.mubr.bf16.mxu0 0
  %120 = vmatmul.mubr.bf16.gmra.mrb[0].mxu0 %v72
  %v121 = vpop.f32.mrb[0].mxu0
  %v122 = vadd.f32 %v33, %v121
  %v123 = vpop.f32.mrb[0].mxu0
  %v124 = vpop.f32.mrb[0].mxu0
  %v125 = vadd.f32 %v33, %v124
  %v126 = vpop.f32.mrb[0].mxu0
  %127 = vmatprep.mubr.bf16.mxu0 0
  %128 = vmatmul.mubr.bf16.gmra.mrb[0].mxu0 %v75
  %v129 = vpop.f32.mrb[0].mxu0
  %v130 = vadd.f32 %v33, %v129
  %v131 = vpop.f32.mrb[0].mxu0
  %v132 = vpop.f32.mrb[0].mxu0
  %v133 = vadd.f32 %v33, %v132
  %v134 = vpop.f32.mrb[0].mxu0
  %135 = vmatprep.mubr.bf16.mxu0 0
  %136 = vmatmul.mubr.bf16.gmra.mrb[0].mxu0 %v78
  %v137 = vpop.f32.mrb[0].mxu0
  %v138 = vadd.f32 %v33, %v137
  %v139 = vpop.f32.mrb[0].mxu0
  %v140 = vpop.f32.mrb[0].mxu0
  %v141 = vadd.f32 %v33, %v140
  %v142 = vpop.f32.mrb[0].mxu0
  %143 = vmatprep.mubr.bf16.mxu0 0
  %144 = vmatmul.mubr.bf16.gmra.mrb[0].mxu0 %v81
  %v145 = vpop.f32.mrb[0].mxu0
  %v146 = vadd.f32 %v33, %v145
  %v147 = vpop.f32.mrb[0].mxu0
  %v148 = vpop.f32.mrb[0].mxu0
  %v149 = vadd.f32 %v33, %v148
  %v150 = vpop.f32.mrb[0].mxu0
  %151 = vdwg.mxu0
  %vm152 = vcmask 130048
  %153 = vst.msk [vmem:[%s3] sm:$0xff] %vm152, %v122
  %154 = vst.msk [vmem:[%s3 + $0x8] sm:$0xff] %vm152, %v125
  %155 = vst.msk [vmem:[%s3 + $0x10] sm:$0xff] %vm152, %v130
  %156 = vst.msk [vmem:[%s3 + $0x18] sm:$0xff] %vm152, %v133
  %157 = vst.msk [vmem:[%s3 + $0x20] sm:$0xff] %vm152, %v138
  %158 = vst.msk [vmem:[%s3 + $0x28] sm:$0xff] %vm152, %v141
  %159 = vst.msk [vmem:[%s3 + $0x30] sm:$0xff] %vm152, %v146
  %160 = vst.msk [vmem:[%s3 + $0x38] sm:$0xff] %vm152, %v149
  // Predicated region
  $region14: #{tpu_custom_call.1} parent=0 // pred_check
    _
  $region15: #{tpu_custom_call.1} parent=0 // pred_check_branch
    %162 = sbr.rel (0) target = $region17
  $region16: #{tpu_custom_call.1} parent=0 // pred_region
    _
  $region17: #{tpu_custom_call.1} parent=0 // pred_fallthru
    _
  // Predicated region
  $region18: #{tpu_custom_call.1} parent=0 // pred_check
    _
  $region19: #{tpu_custom_call.1} parent=0 // pred_check_branch
    %164 = sbr.rel (0) target = $region21
  $region20: #{tpu_custom_call.1} parent=0 // pred_region
    _
  $region21: #{tpu_custom_call.1} parent=0 // pred_fallthru
    _

</llo_original>
